<compile_context>
chip_gen: v5e
topology: v5e:2x2
jax: 0.10.0
libtpu: 0.0.40
codegen_flags: <defaults>
</compile_context>

<pallas_src>
import functools

import jax
import jax.numpy as jnp
from jax import lax
from jax.experimental import pallas as pl
from jax.experimental.pallas import tpu as pltpu

_LANE = 128
_TARGET_VMEM_BYTES = 40 * 1024 * 1024   # design point for the working set
_VMEM_LIMIT_CAP = 48 * 1024 * 1024      # stays under v7x's 64 MiB physical
_VMEM_LIMIT_FLOOR = 16 * 1024 * 1024    # smallest default scoped limit (v5e)


def _round_up(x, m):
    return ((x + m - 1) // m) * m


def _cdiv(a, b):
    return -(-a // b)


def _plan_tiles(m, k, in_itemsize):
    """Lane-dense M padding, gram row-block size, byte-budgeted K tiling."""
    m_pad = _round_up(max(m, 1), _LANE)

    # Row blocks of the gram: a "parallel" axis for the v7x megacore on large M
    # and a bound on the (tm, m_pad) accumulator; single block for small M.
    if m_pad <= 2 * _LANE:
        tm = m_pad
    elif (m_pad // _LANE) % 2 == 0:
        tm = 2 * _LANE
    else:
        tm = _LANE
    n_m = m_pad // tm

    acc_bytes = tm * m_pad * 4
    # Per K-column bytes: 2 input arrays x 2 pipeline buffers x m_pad rows.
    per_col_bytes = 2 * 2 * m_pad * in_itemsize
    input_budget = _TARGET_VMEM_BYTES - acc_bytes - (1 << 20)
    max_tk = max(_LANE, (input_budget // per_col_bytes) // _LANE * _LANE)

    # Pad K to 128 first; only then split into near-equal 128-multiple tiles,
    # so grid over-padding is a fraction of a tile, never a whole one.
    k_pad = _round_up(max(k, 1), _LANE)
    if k_pad <= max_tk:
        tk, n_k = k_pad, 1
    else:
        n_k = _cdiv(k_pad, max_tk)
        tk = _round_up(_cdiv(k_pad, n_k), _LANE)
    k_final = n_k * tk

    vmem_need = acc_bytes + 2 * 2 * m_pad * tk * in_itemsize + 2 * 8 * _LANE * 4
    vmem_limit = int(min(_VMEM_LIMIT_CAP,
                         max(_VMEM_LIMIT_FLOOR, vmem_need + (4 << 20))))
    return m_pad, tm, n_m, tk, n_k, k_final, vmem_limit


def _gram_diff_mse_kernel(r_ref, t_ref, o_ref, acc_ref, *,
                          tm, n_m, inv_mk, compute_dtype):
    """One (row-block, K-tile) step of sum((gram(r) - gram(t)) / (M*K))^2.

    r_ref, t_ref : (M_pad, tk) feature tiles (producer dtype, e.g. f32)
    o_ref        : (1, 8, 128) lane-dense per-row-block partial SSE
    acc_ref      : (tm, M_pad) f32 VMEM accumulator of the gram *difference*
    """
    i = pl.program_id(0)          # gram row block   (parallel)
    k = pl.program_id(1)          # contraction tile (arbitrary, innermost)
    n_k = pl.num_programs(1)

    r_full = r_ref[...]
    t_full = t_ref[...]
    if n_m == 1:
        r_rows, t_rows = r_full, t_full
    else:
        row0 = pl.multiple_of(i * tm, tm)
        r_rows = r_ref[pl.ds(row0, tm), :]
        t_rows = t_ref[pl.ds(row0, tm), :]

    # In-kernel cast: HBM traffic stays at the producer dtype, MXU operands
    # can still be bf16 for the compute-bound (large M) layers.
    if r_full.dtype != compute_dtype:
        r_full = r_full.astype(compute_dtype)
        t_full = t_full.astype(compute_dtype)
        if n_m == 1:
            r_rows, t_rows = r_full, t_full
        else:
            r_rows = r_rows.astype(compute_dtype)
            t_rows = t_rows.astype(compute_dtype)

    # rows @ full.T over this K-tile -> (tm, M_pad), f32 MXU accumulation.
    dims = (((1,), (1,)), ((), ()))
    contrib = (
        lax.dot_general(r_rows, r_full, dims, preferred_element_type=jnp.float32)
        - lax.dot_general(t_rows, t_full, dims, preferred_element_type=jnp.float32)
    )

    @pl.when(k == 0)
    def _():
        acc_ref[...] = contrib

    @pl.when(k > 0)
    def _():
        acc_ref[...] += contrib

    @pl.when(k == n_k - 1)
    def _():
        # Normalize BEFORE squaring (f32 conditioning), then reduce.
        d = acc_ref[...] * jnp.float32(inv_mk)
        partial = jnp.sum(d * d)
        o_ref[...] = jnp.broadcast_to(partial, o_ref.shape)


def _gram_mse_layer(r_flat, t_flat, *, compute_dtype):
    """sum over (M,M) of ((gram(r) - gram(t)))^2 with gram already normalized
    by 1/(M*K). The caller multiplies by style_weight / M^2 (mse 'mean')."""
    m, k = r_flat.shape
    in_itemsize = jnp.dtype(r_flat.dtype).itemsize
    compute_dtype = jnp.dtype(compute_dtype)

    m_pad, tm, n_m, tk, n_k, k_final, vmem_limit = _plan_tiles(m, k, in_itemsize)

    if (m_pad, k_final) != (m, k):
        # Zero padding is exact: padded rows/cols contribute 0 to both grams
        # and the normalisation uses the original (m, k).
        pad = ((0, m_pad - m), (0, k_final - k))
        r_flat = jnp.pad(r_flat, pad)
        t_flat = jnp.pad(t_flat, pad)

    inv_mk = 1.0 / (float(m) * float(k))
    kernel = functools.partial(
        _gram_diff_mse_kernel,
        tm=tm, n_m=n_m, inv_mk=inv_mk, compute_dtype=compute_dtype)

    out = pl.pallas_call(
        kernel,
        out_shape=jax.ShapeDtypeStruct((n_m, 8, _LANE), jnp.float32),
        grid_spec=pltpu.PrefetchScalarGridSpec(
            num_scalar_prefetch=0,
            grid=(n_m, n_k),
            in_specs=[
                pl.BlockSpec((m_pad, tk), lambda i, kk: (0, kk)),
                pl.BlockSpec((m_pad, tk), lambda i, kk: (0, kk)),
            ],
            out_specs=pl.BlockSpec((1, 8, _LANE), lambda i, kk: (i, 0, 0)),
            scratch_shapes=[pltpu.VMEM((tm, m_pad), jnp.float32)],
        ),
        compiler_params=pltpu.CompilerParams(
            dimension_semantics=("parallel", "arbitrary"),
            vmem_limit_bytes=vmem_limit,
        ),
    )(r_flat, t_flat)

    # Sum of per-row-block partial SSEs (all 128 lanes hold the same value).
    return jnp.sum(out[:, 0, 0])


# -------------------------- pure-JAX reference ------------------------------
def _gram_ref(x):
    n, c, h, w = x.shape
    f = x.reshape(n * c, h * w).astype(jnp.float32)
    return (f @ f.T) / (n * c * h * w)


def _style_loss_ref(style_weights, targets, results):
    total = jnp.float32(0.0)
    for i in range(len(targets)):
        g = _gram_ref(results[i])
        a = _gram_ref(targets[i])
        total = total + jnp.float32(style_weights[i]) * jnp.mean((g - a) ** 2)
    return total


def style_loss(style_weights, target_feature_maps, result_feature_maps,
               compute_dtype=jnp.float32, xla_fallback_elems=0):
    """JAX/Pallas equivalent of StyleLoss.forward (style_weights are static).

    xla_fallback_elems: layers with M*K at or below this element count are
    computed in plain XLA (per-pallas_call overhead dominates tiny layers).
    Default 0 so every layer goes through the Pallas kernel.
    """
    total = jnp.float32(0.0)
    for idx in range(len(target_feature_maps)):
        t = target_feature_maps[idx]
        r = result_feature_maps[idx]
        n, c, h, w = t.shape
        m, k = n * c, h * w
        weight = float(style_weights[idx])
        if m * k <= xla_fallback_elems:
            layer_loss = jnp.float32(weight) * jnp.mean(
                (_gram_ref(r) - _gram_ref(t)) ** 2)
        else:
            sse = _gram_mse_layer(r.reshape(m, k), t.reshape(m, k),
                                  compute_dtype=compute_dtype)
            # mse 'mean' (1/M^2) and the per-layer style weight.
            layer_loss = sse * jnp.float32(weight / (float(m) * float(m)))
        total = total + layer_loss
    return total


if __name__ == "__main__":
    key = jax.random.PRNGKey(0)
    k1, k2, k3, k4 = jax.random.split(key, 4)

    # Two "layers" of feature maps, NCHW, small shapes.
    target_feature_maps = [
        jax.random.normal(k1, (2, 4, 16, 16), dtype=jnp.float32),
        jax.random.normal(k2, (2, 8, 8, 8), dtype=jnp.float32),
    ]
    result_feature_maps = [
        jax.random.normal(k3, (2, 4, 16, 16), dtype=jnp.float32),
        jax.random.normal(k4, (2, 8, 8, 8), dtype=jnp.float32),
    ]
    # Deterministic "parameters" of the module.
    style_weights = [0.5, 2.0]

    ref = _style_loss_ref(style_weights, target_feature_maps, result_feature_maps)

    # f32 path: exact semantics, tight tolerance.
    out_f32 = style_loss(style_weights, target_feature_maps, result_feature_maps)
    out_f32 = jax.block_until_ready(out_f32)
    assert jnp.allclose(out_f32, ref, rtol=1e-5, atol=1e-6), (out_f32, ref)

    # bf16 compute path (in-kernel cast, f32 MXU accumulation): validated at a
    # looser tolerance.
    out_bf16 = style_loss(style_weights, target_feature_maps, result_feature_maps,
                          compute_dtype=jnp.bfloat16)
    out_bf16 = jax.block_until_ready(out_bf16)
    assert jnp.allclose(out_bf16, ref, rtol=5e-2, atol=1e-5), (out_bf16, ref)

    print("KERNEL_OK")
</pallas_src>

<mosaic_0001>
module attributes {stable_mosaic.version = 11 : i64} {
  func.func @_gram_diff_mse_kernel(%arg0: i32, %arg1: i32, %arg2: memref<128x256xf32, #tpu.memory_space<vmem>>, %arg3: memref<128x256xf32, #tpu.memory_space<vmem>>, %arg4: memref<1x8x128xf32, #tpu.memory_space<vmem>>, %arg5: memref<128x128xf32, #tpu.memory_space<vmem>>) attributes {dimension_semantics = [#tpu.dimension_semantics<parallel>, #tpu.dimension_semantics<arbitrary>], iteration_bounds = array<i64: 1, 1>, scalar_prefetch = 0 : i64, scratch_operands = 1 : i64, tpu.core_type = #tpu.core_type<tc>, window_params = [{transform_indices = @transform_0, window_bounds = array<i64: 128, 256>}, {transform_indices = @transform_1, window_bounds = array<i64: 128, 256>}, {transform_indices = @transform_2, window_bounds = array<i64: 1, 8, 128>}]} {
    %c0 = arith.constant 0 : index
    %c0_0 = arith.constant 0 : index
    %0 = vector.load %arg2[%c0, %c0_0] : memref<128x256xf32, #tpu.memory_space<vmem>>, vector<128x256xf32>
    %c0_1 = arith.constant 0 : index
    %c0_2 = arith.constant 0 : index
    %1 = vector.load %arg3[%c0_1, %c0_2] : memref<128x256xf32, #tpu.memory_space<vmem>>, vector<128x256xf32>
    %cst = arith.constant dense<0.000000e+00> : vector<128x128xf32>
    %2 = tpu.matmul %0, %0, %cst {dimension_numbers = #tpu.dot_dimension_numbers<[1], [1], [0], [0], [0, 0, 1, 0], [], []>} : vector<128x256xf32>, vector<128x256xf32>, vector<128x128xf32> -> vector<128x128xf32>
    %cst_3 = arith.constant dense<0.000000e+00> : vector<128x128xf32>
    %3 = tpu.matmul %1, %1, %cst_3 {dimension_numbers = #tpu.dot_dimension_numbers<[1], [1], [0], [0], [0, 0, 1, 0], [], []>} : vector<128x256xf32>, vector<128x256xf32>, vector<128x128xf32> -> vector<128x128xf32>
    %4 = arith.subf %2, %3 : vector<128x128xf32>
    %c0_i32 = arith.constant 0 : i32
    %5 = arith.cmpi eq, %arg1, %c0_i32 : i32
    %6 = arith.extui %5 : i1 to i32
    %c0_i32_4 = arith.constant 0 : i32
    %7 = arith.cmpi ne, %6, %c0_i32_4 : i32
    scf.if %7 {
      %c0_9 = arith.constant 0 : index
      %c0_10 = arith.constant 0 : index
      %14 = vector.load %arg5[%c0_9, %c0_10] : memref<128x128xf32, #tpu.memory_space<vmem>>, vector<128x128xf32>
      tpu.vector_store %arg5[%c0_9, %c0_10], %4 {strides = array<i32>} : memref<128x128xf32, #tpu.memory_space<vmem>>, vector<128x128xf32>,
    } else {
    }
    %c0_i32_5 = arith.constant 0 : i32
    %8 = arith.cmpi sgt, %arg1, %c0_i32_5 : i32
    %9 = arith.extui %8 : i1 to i32
    %c0_i32_6 = arith.constant 0 : i32
    %10 = arith.cmpi ne, %9, %c0_i32_6 : i32
    scf.if %10 {
      %c0_9 = arith.constant 0 : index
      %c0_10 = arith.constant 0 : index
      %14 = vector.load %arg5[%c0_9, %c0_10] : memref<128x128xf32, #tpu.memory_space<vmem>>, vector<128x128xf32>
      %15 = arith.addf %14, %4 : vector<128x128xf32>
      %c0_11 = arith.constant 0 : index
      %c0_12 = arith.constant 0 : index
      %16 = vector.load %arg5[%c0_11, %c0_12] : memref<128x128xf32, #tpu.memory_space<vmem>>, vector<128x128xf32>
      tpu.vector_store %arg5[%c0_11, %c0_12], %15 {strides = array<i32>} : memref<128x128xf32, #tpu.memory_space<vmem>>, vector<128x128xf32>,
    } else {
    }
    %c0_i32_7 = arith.constant 0 : i32
    %11 = arith.cmpi eq, %arg1, %c0_i32_7 : i32
    %12 = arith.extui %11 : i1 to i32
    %c0_i32_8 = arith.constant 0 : i32
    %13 = arith.cmpi ne, %12, %c0_i32_8 : i32
    scf.if %13 {
      %c0_9 = arith.constant 0 : index
      %c0_10 = arith.constant 0 : index
      %14 = vector.load %arg5[%c0_9, %c0_10] : memref<128x128xf32, #tpu.memory_space<vmem>>, vector<128x128xf32>
      %cst_11 = arith.constant 4.8828125E-4 : f32
      %15 = vector.broadcast %cst_11 : f32 to vector<128x128xf32>
      %16 = arith.mulf %14, %15 : vector<128x128xf32>
      %17 = arith.mulf %16, %16 : vector<128x128xf32>
      %18 = vector.shape_cast %17 : vector<128x128xf32> to vector<1x128x128xf32>
      %cst_12 = arith.constant dense<0.000000e+00> : vector<1xf32>
      %19 = vector.multi_reduction <add>, %18, %cst_12 [1, 2] : vector<1x128x128xf32> to vector<1xf32>
      %20 = vector.shape_cast %19 : vector<1xf32> to vector<1x1x1xf32>
      %21 = vector.extract %20[0, 0, 0] : f32 from vector<1x1x1xf32>
      %22 = vector.broadcast %21 : f32 to vector<1x8x128xf32>
      %c0_13 = arith.constant 0 : index
      %c0_14 = arith.constant 0 : index
      %c0_15 = arith.constant 0 : index
      %23 = vector.load %arg4[%c0_13, %c0_14, %c0_15] : memref<1x8x128xf32, #tpu.memory_space<vmem>>, vector<1x8x128xf32>
      tpu.vector_store %arg4[%c0_13, %c0_14, %c0_15], %22 {strides = array<i32>} : memref<1x8x128xf32, #tpu.memory_space<vmem>>, vector<1x8x128xf32>,
    } else {
    }
    return
  }
  func.func @transform_0(%arg0: i32, %arg1: i32) -> (i32, i32) {
    %c0_i32 = arith.constant 0 : i32
    %c0_i32_0 = arith.constant 0 : i32
    return %c0_i32, %arg1 : i32, i32
  }
  func.func @transform_1(%arg0: i32, %arg1: i32) -> (i32, i32) {
    %c0_i32 = arith.constant 0 : i32
    %c0_i32_0 = arith.constant 0 : i32
    return %c0_i32, %arg1 : i32, i32
  }
  func.func @transform_2(%arg0: i32, %arg1: i32) -> (i32, i32, i32) {
    %c0_i32 = arith.constant 0 : i32
    %c0_i32_0 = arith.constant 0 : i32
    %c0_i32_1 = arith.constant 0 : i32
    return %arg0, %c0_i32, %c0_i32_0 : i32, i32, i32
  }
}

</mosaic_0001>

<llo_original>
// kernel: tpu_custom_call.1
$region0: #{tpu_custom_call.1}
  #allocation0 [shape = 'u32[]', space=smem, size = 0x4, offset = 0x4, fixed_abs, tag = 'smem constant byte address 0x4 - core index']
  #allocation1 [shape = 'u32[72,128]{1,0:T(1,128)}', space=vmem, size = 0x9000, scoped, tag = 'internal scratch']
  #allocation2 [shape = 'f32[128,128]{1,0:T(8,128)}', space=vmem, size = 0x10000, scoped, tag = 'scratch operand']
  %s0 = inlined_call_operand.hbm [shape: f32[128,256], index: 0, kind: input, shape index: {}]
  %s1 = inlined_call_operand.hbm [shape: f32[128,256], index: 1, kind: input, shape index: {}]
  %s2 = inlined_call_operand.hbm [shape: f32[1,8,128], index: 2, kind: output, shape index: {}]
  %s3 = sld [smem:[#allocation0]]
  $region38: #{tpu_custom_call.1} parent=0
    _
  %s5 = ssub.s32 1, %s3
  %s6 = scalar_select 0, %s5, %s3
  $region1: #{tpu_custom_call.1} parent=0
    #allocation3 [shape = 'u8[131072]{0}', space=vmem, size = 0x20000, scoped, tag = 'input window, operand 0, single buffered']
    #allocation4 [shape = 's32[1]{0}', space=sflag, size = 0x4, scoped, tag = 'scoped memory for tpu_custom_call.1']
    #allocation5 [shape = 's32[1]{0}', space=sflag, size = 0x4, scoped, tag = 'scoped memory for tpu_custom_call.1']
    #allocation6 [shape = 'u8[131072]{0}', space=vmem, size = 0x20000, scoped, tag = 'input window, operand 1, single buffered']
    #allocation7 [shape = 's32[1]{0}', space=sflag, size = 0x4, scoped, tag = 'scoped memory for tpu_custom_call.1']
    #allocation8 [shape = 'u8[4096]{0}', space=vmem, size = 0x1000, scoped, tag = 'output window, operand 0, single buffered']
    %7 = vsyncpa [#allocation4], 0
    %8 = vsyncpa [#allocation7], 0
    %9 = vsyncpa [#allocation5], 0
    // Predicated region
    $region2: #{tpu_custom_call.1} parent=1 // pred_check
      _
    $region3: #{tpu_custom_call.1} parent=1 // pred_check_branch
      %11 = sbr.rel (0) target = $region5
    $region4: #{tpu_custom_call.1} parent=1 // pred_region
      %13 = vsyncadd [#allocation4], 0
      %s14 = sshll.u32 %s0, 4
      %s15 = int_to_ptr.hbm [resolvable:$true] %s14
      %s16 = sshll.u32 [#allocation3], 4
      %s17 = int_to_ptr.vmem [resolvable:$true] %s16
      %22 = dma.hbm_to_vmem [thread:$0]  %s15, 4096, %s17, [#allocation4], 256, 256, 16
    $region5: #{tpu_custom_call.1} parent=1 // pred_fallthru
      _
    // Predicated region
    $region6: #{tpu_custom_call.1} parent=1 // pred_check
      _
    $region7: #{tpu_custom_call.1} parent=1 // pred_check_branch
      %24 = sbr.rel (0) target = $region9
    $region8: #{tpu_custom_call.1} parent=1 // pred_region
      %26 = vsyncadd [#allocation7], 0
      %s27 = sshll.u32 %s1, 4
      %s28 = int_to_ptr.hbm [resolvable:$true] %s27
      %s29 = sshll.u32 [#allocation6], 4
      %s30 = int_to_ptr.vmem [resolvable:$true] %s29
      %35 = dma.hbm_to_vmem [thread:$0]  %s28, 4096, %s30, [#allocation7], 256, 256, 16
    $region9: #{tpu_custom_call.1} parent=1 // pred_fallthru
      _
    // Predicated region
    $region10: #{tpu_custom_call.1} parent=1 // pred_check
      _
    $region11: #{tpu_custom_call.1} parent=1 // pred_check_branch
      %37 = sbr.rel (0) target = $region13
    $region12: #{tpu_custom_call.1} parent=1 // pred_region
      %39 = dma.done [#allocation4], 4096
    $region13: #{tpu_custom_call.1} parent=1 // pred_fallthru
      _
    // Predicated region
    $region14: #{tpu_custom_call.1} parent=1 // pred_check
      _
    $region15: #{tpu_custom_call.1} parent=1 // pred_check_branch
      %41 = sbr.rel (0) target = $region17
    $region16: #{tpu_custom_call.1} parent=1 // pred_region
      %43 = dma.done [#allocation7], 4096
    $region17: #{tpu_custom_call.1} parent=1 // pred_fallthru
      _
    %v44 = vld [vmem:[#allocation3] sm:$0xff]
    %v45 = vld [vmem:[#allocation3 + $0x8] sm:$0xff]
    %v46 = vld [vmem:[#allocation3 + $0x10] sm:$0xff]
    %v47 = vld [vmem:[#allocation3 + $0x18] sm:$0xff]
    %v48 = vld [vmem:[#allocation3 + $0x20] sm:$0xff]
    %v49 = vld [vmem:[#allocation3 + $0x28] sm:$0xff]
    %v50 = vld [vmem:[#allocation3 + $0x30] sm:$0xff]
    %v51 = vld [vmem:[#allocation3 + $0x38] sm:$0xff]
    %v52 = vld [vmem:[#allocation3 + $0x40] sm:$0xff]
    %v53 = vld [vmem:[#allocation3 + $0x48] sm:$0xff]
    %v54 = vld [vmem:[#allocation3 + $0x50] sm:$0xff]
    %v55 = vld [vmem:[#allocation3 + $0x58] sm:$0xff]
    %v56 = vld [vmem:[#allocation3 + $0x60] sm:$0xff]
    %v57 = vld [vmem:[#allocation3 + $0x68] sm:$0xff]
    %v58 = vld [vmem:[#allocation3 + $0x70] sm:$0xff]
    %v59 = vld [vmem:[#allocation3 + $0x78] sm:$0xff]
    %v60 = vld [vmem:[#allocation3 + $0x80] sm:$0xff]
    %v61 = vld [vmem:[#allocation3 + $0x88] sm:$0xff]
    %v62 = vld [vmem:[#allocation3 + $0x90] sm:$0xff]
    %v63 = vld [vmem:[#allocation3 + $0x98] sm:$0xff]
    %v64 = vld [vmem:[#allocation3 + $0xa0] sm:$0xff]
    %v65 = vld [vmem:[#allocation3 + $0xa8] sm:$0xff]
    %v66 = vld [vmem:[#allocation3 + $0xb0] sm:$0xff]
    %v67 = vld [vmem:[#allocation3 + $0xb8] sm:$0xff]
    %v68 = vld [vmem:[#allocation3 + $0xc0] sm:$0xff]
    %v69 = vld [vmem:[#allocation3 + $0xc8] sm:$0xff]
    %v70 = vld [vmem:[#allocation3 + $0xd0] sm:$0xff]
    %v71 = vld [vmem:[#allocation3 + $0xd8] sm:$0xff]
    %v72 = vld [vmem:[#allocation3 + $0xe0] sm:$0xff]
    %v73 = vld [vmem:[#allocation3 + $0xe8] sm:$0xff]
    %v74 = vld [vmem:[#allocation3 + $0xf0] sm:$0xff]
    %v75 = vld [vmem:[#allocation3 + $0xf8] sm:$0xff]
    %v76 = vld [vmem:[#allocation6] sm:$0xff]
    %v77 = vld [vmem:[#allocation6 + $0x8] sm:$0xff]
    %v78 = vld [vmem:[#allocation6 + $0x10] sm:$0xff]
    %v79 = vld [vmem:[#allocation6 + $0x18] sm:$0xff]
    %v80 = vld [vmem:[#allocation6 + $0x20] sm:$0xff]
    %v81 = vld [vmem:[#allocation6 + $0x28] sm:$0xff]
    %v82 = vld [vmem:[#allocation6 + $0x30] sm:$0xff]
    %v83 = vld [vmem:[#allocation6 + $0x38] sm:$0xff]
    %v84 = vld [vmem:[#allocation6 + $0x40] sm:$0xff]
    %v85 = vld [vmem:[#allocation6 + $0x48] sm:$0xff]
    %v86 = vld [vmem:[#allocation6 + $0x50] sm:$0xff]
    %v87 = vld [vmem:[#allocation6 + $0x58] sm:$0xff]
    %v88 = vld [vmem:[#allocation6 + $0x60] sm:$0xff]
    %v89 = vld [vmem:[#allocation6 + $0x68] sm:$0xff]
    %v90 = vld [vmem:[#allocation6 + $0x70] sm:$0xff]
    %v91 = vld [vmem:[#allocation6 + $0x78] sm:$0xff]
    %v92 = vld [vmem:[#allocation6 + $0x80] sm:$0xff]
    %v93 = vld [vmem:[#allocation6 + $0x88] sm:$0xff]
    %v94 = vld [vmem:[#allocation6 + $0x90] sm:$0xff]
    %v95 = vld [vmem:[#allocation6 + $0x98] sm:$0xff]
    %v96 = vld [vmem:[#allocation6 + $0xa0] sm:$0xff]
    %v97 = vld [vmem:[#allocation6 + $0xa8] sm:$0xff]
    %v98 = vld [vmem:[#allocation6 + $0xb0] sm:$0xff]
    %v99 = vld [vmem:[#allocation6 + $0xb8] sm:$0xff]
    %v100 = vld [vmem:[#allocation6 + $0xc0] sm:$0xff]
    %v101 = vld [vmem:[#allocation6 + $0xc8] sm:$0xff]
    %v102 = vld [vmem:[#allocation6 + $0xd0] sm:$0xff]
    %v103 = vld [vmem:[#allocation6 + $0xd8] sm:$0xff]
    %v104 = vld [vmem:[#allocation6 + $0xe0] sm:$0xff]
    %v105 = vld [vmem:[#allocation6 + $0xe8] sm:$0xff]
    %v106 = vld [vmem:[#allocation6 + $0xf0] sm:$0xff]
    %v107 = vld [vmem:[#allocation6 + $0xf8] sm:$0xff]
    %108 = vmatpush.xpose.msra.mxu0 %v74
    %109 = vmatpush.xpose.msra.mxu0 %v72
    %110 = vmatpush.xpose.msra.mxu0 %v70
    %111 = vmatpush.xpose.msra.mxu0 %v68
    %112 = vmatpush.xpose.msra.mxu0 %v66
    %113 = vmatpush.xpose.msra.mxu0 %v64
    %114 = vmatpush.xpose.msra.mxu0 %v62
    %115 = vmatpush.xpose.msra.mxu0 %v60
    %116 = vmatpush.xpose.msra.mxu0 %v58
    %117 = vmatpush.xpose.msra.mxu0 %v56
    %118 = vmatpush.xpose.msra.mxu0 %v54
    %119 = vmatpush.xpose.msra.mxu0 %v52
    %120 = vmatpush.xpose.msra.mxu0 %v50
    %121 = vmatpush.xpose.msra.mxu0 %v48
    %122 = vmatpush.xpose.msra.mxu0 %v46
    %123 = vmatpush.xpose.msra.mxu0 %v44
    %124 = vmatmul.f32.gmra.mxu0 %v44
    %v125 = vpop.f32.mrf.mxu0
    %v126 = vadd.f32 0.0, %v125
    %127 = vmatmul.f32.gmra.mxu0 %v46
    %v128 = vpop.f32.mrf.mxu0
    %v129 = vadd.f32 0.0, %v128
    %130 = vmatmul.f32.gmra.mxu0 %v48
    %v131 = vpop.f32.mrf.mxu0
    %v132 = vadd.f32 0.0, %v131
    %133 = vmatmul.f32.gmra.mxu0 %v50
    %v134 = vpop.f32.mrf.mxu0
    %v135 = vadd.f32 0.0, %v134
    %136 = vmatmul.f32.gmra.mxu0 %v52
    %v137 = vpop.f32.mrf.mxu0
    %v138 = vadd.f32 0.0, %v137
    %139 = vmatmul.f32.gmra.mxu0 %v54
    %v140 = vpop.f32.mrf.mxu0
    %v141 = vadd.f32 0.0, %v140
    %142 = vmatmul.f32.gmra.mxu0 %v56
    %v143 = vpop.f32.mrf.mxu0
    %v144 = vadd.f32 0.0, %v143
    %145 = vmatmul.f32.gmra.mxu0 %v58
    %v146 = vpop.f32.mrf.mxu0
    %v147 = vadd.f32 0.0, %v146
    %148 = vmatmul.f32.gmra.mxu0 %v60
    %v149 = vpop.f32.mrf.mxu0
    %v150 = vadd.f32 0.0, %v149
    %151 = vmatmul.f32.gmra.mxu0 %v62
    %v152 = vpop.f32.mrf.mxu0
    %v153 = vadd.f32 0.0, %v152
    %154 = vmatmul.f32.gmra.mxu0 %v64
    %v155 = vpop.f32.mrf.mxu0
    %v156 = vadd.f32 0.0, %v155
    %157 = vmatmul.f32.gmra.mxu0 %v66
    %v158 = vpop.f32.mrf.mxu0
    %v159 = vadd.f32 0.0, %v158
    %160 = vmatmul.f32.gmra.mxu0 %v68
    %v161 = vpop.f32.mrf.mxu0
    %v162 = vadd.f32 0.0, %v161
    %163 = vmatmul.f32.gmra.mxu0 %v70
    %v164 = vpop.f32.mrf.mxu0
    %v165 = vadd.f32 0.0, %v164
    %166 = vmatmul.f32.gmra.mxu0 %v72
    %v167 = vpop.f32.mrf.mxu0
    %v168 = vadd.f32 0.0, %v167
    %169 = vmatmul.f32.gmra.mxu0 %v74
    %v170 = vpop.f32.mrf.mxu0
    %v171 = vadd.f32 0.0, %v170
    %172 = vdwg.mxu0
    %173 = vmatpush.xpose.msra.mxu0 %v75
    %174 = vmatpush.xpose.msra.mxu0 %v73
    %175 = vmatpush.xpose.msra.mxu0 %v71
    %176 = vmatpush.xpose.msra.mxu0 %v69
    %177 = vmatpush.xpose.msra.mxu0 %v67
    %178 = vmatpush.xpose.msra.mxu0 %v65
    %179 = vmatpush.xpose.msra.mxu0 %v63
    %180 = vmatpush.xpose.msra.mxu0 %v61
    %181 = vmatpush.xpose.msra.mxu0 %v59
    %182 = vmatpush.xpose.msra.mxu0 %v57
    %183 = vmatpush.xpose.msra.mxu0 %v55
    %184 = vmatpush.xpose.msra.mxu0 %v53
    %185 = vmatpush.xpose.msra.mxu0 %v51
    %186 = vmatpush.xpose.msra.mxu0 %v49
    %187 = vmatpush.xpose.msra.mxu0 %v47
    %188 = vmatpush.xpose.msra.mxu0 %v45
    %189 = vmatmul.f32.gmra.mxu0 %v45
    %v190 = vpop.f32.mrf.mxu0
    %v191 = vadd.f32 %v126, %v190
    %192 = vmatmul.f32.gmra.mxu0 %v47
    %v193 = vpop.f32.mrf.mxu0
    %v194 = vadd.f32 %v129, %v193
    %195 = vmatmul.f32.gmra.mxu0 %v49
    %v196 = vpop.f32.mrf.mxu0
    %v197 = vadd.f32 %v132, %v196
    %198 = vmatmul.f32.gmra.mxu0 %v51
    %v199 = vpop.f32.mrf.mxu0
    %v200 = vadd.f32 %v135, %v199
    %201 = vmatmul.f32.gmra.mxu0 %v53
    %v202 = vpop.f32.mrf.mxu0
    %v203 = vadd.f32 %v138, %v202
    %204 = vmatmul.f32.gmra.mxu0 %v55
    %v205 = vpop.f32.mrf.mxu0
    %v206 = vadd.f32 %v141, %v205
    %207 = vmatmul.f32.gmra.mxu0 %v57
    %v208 = vpop.f32.mrf.mxu0
    %v209 = vadd.f32 %v144, %v208
    %210 = vmatmul.f32.gmra.mxu0 %v59
    %v211 = vpop.f32.mrf.mxu0
    %v212 = vadd.f32 %v147, %v211
    %213 = vmatmul.f32.gmra.mxu0 %v61
    %v214 = vpop.f32.mrf.mxu0
    %v215 = vadd.f32 %v150, %v214
    %216 = vmatmul.f32.gmra.mxu0 %v63
    %v217 = vpop.f32.mrf.mxu0
    %v218 = vadd.f32 %v153, %v217
    %219 = vmatmul.f32.gmra.mxu0 %v65
    %v220 = vpop.f32.mrf.mxu0
    %v221 = vadd.f32 %v156, %v220
    %222 = vmatmul.f32.gmra.mxu0 %v67
    %v223 = vpop.f32.mrf.mxu0
    %v224 = vadd.f32 %v159, %v223
    %225 = vmatmul.f32.gmra.mxu0 %v69
    %v226 = vpop.f32.mrf.mxu0
    %v227 = vadd.f32 %v162, %v226
    %228 = vmatmul.f32.gmra.mxu0 %v71
    %v229 = vpop.f32.mrf.mxu0
    %v230 = vadd.f32 %v165, %v229
    %231 = vmatmul.f32.gmra.mxu0 %v73
    %v232 = vpop.f32.mrf.mxu0
    %v233 = vadd.f32 %v168, %v232
    %234 = vmatmul.f32.gmra.mxu0 %v75
    %v235 = vpop.f32.mrf.mxu0
    %v236 = vadd.f32 %v171, %v235
    %237 = vdwg.mxu0
    %238 = vmatpush.xpose.msra.mxu0 %v106
    %239 = vmatpush.xpose.msra.mxu0 %v104
    %240 = vmatpush.xpose.msra.mxu0 %v102
    %241 = vmatpush.xpose.msra.mxu0 %v100
    %242 = vmatpush.xpose.msra.mxu0 %v98
    %243 = vmatpush.xpose.msra.mxu0 %v96
    %244 = vmatpush.xpose.msra.mxu0 %v94
    %245 = vmatpush.xpose.msra.mxu0 %v92
    %246 = vmatpush.xpose.msra.mxu0 %v90
    %247 = vmatpush.xpose.msra.mxu0 %v88
    %248 = vmatpush.xpose.msra.mxu0 %v86
    %249 = vmatpush.xpose.msra.mxu0 %v84
    %250 = vmatpush.xpose.msra.mxu0 %v82
    %251 = vmatpush.xpose.msra.mxu0 %v80
    %252 = vmatpush.xpose.msra.mxu0 %v78
    %253 = vmatpush.xpose.msra.mxu0 %v76
    %254 = vmatmul.f32.gmra.mxu0 %v76
    %v255 = vpop.f32.mrf.mxu0
    %v256 = vadd.f32 0.0, %v255
    %257 = vmatmul.f32.gmra.mxu0 %v78
    %v258 = vpop.f32.mrf.mxu0
    %v259 = vadd.f32 0.0, %v258
    %260 = vmatmul.f32.gmra.mxu0 %v80
    %v261 = vpop.f32.mrf.mxu0
    %v262 = vadd.f32 0.0, %v261
    %263 = vmatmul.f32.gmra.mxu0 %v82
    %v264 = vpop.f32.mrf.mxu0
    %v265 = vadd.f32 0.0, %v264
    %266 = vmatmul.f32.gmra.mxu0 %v84
    %v267 = vpop.f32.mrf.mxu0
    %v268 = vadd.f32 0.0, %v267
    %269 = vmatmul.f32.gmra.mxu0 %v86
    %v270 = vpop.f32.mrf.mxu0
    %v271 = vadd.f32 0.0, %v270
    %272 = vmatmul.f32.gmra.mxu0 %v88
    %v273 = vpop.f32.mrf.mxu0
    %v274 = vadd.f32 0.0, %v273
    %275 = vmatmul.f32.gmra.mxu0 %v90
    %v276 = vpop.f32.mrf.mxu0
    %v277 = vadd.f32 0.0, %v276
    %278 = vmatmul.f32.gmra.mxu0 %v92
    %v279 = vpop.f32.mrf.mxu0
    %v280 = vadd.f32 0.0, %v279
    %281 = vmatmul.f32.gmra.mxu0 %v94
    %v282 = vpop.f32.mrf.mxu0
    %v283 = vadd.f32 0.0, %v282
    %284 = vmatmul.f32.gmra.mxu0 %v96
    %v285 = vpop.f32.mrf.mxu0
    %v286 = vadd.f32 0.0, %v285
    %287 = vmatmul.f32.gmra.mxu0 %v98
    %v288 = vpop.f32.mrf.mxu0
    %v289 = vadd.f32 0.0, %v288
    %290 = vmatmul.f32.gmra.mxu0 %v100
    %v291 = vpop.f32.mrf.mxu0
    %v292 = vadd.f32 0.0, %v291
    %293 = vmatmul.f32.gmra.mxu0 %v102
    %v294 = vpop.f32.mrf.mxu0
    %v295 = vadd.f32 0.0, %v294
    %296 = vmatmul.f32.gmra.mxu0 %v104
    %v297 = vpop.f32.mrf.mxu0
    %v298 = vadd.f32 0.0, %v297
    %299 = vmatmul.f32.gmra.mxu0 %v106
    %v300 = vpop.f32.mrf.mxu0
    %v301 = vadd.f32 0.0, %v300
    %302 = vdwg.mxu0
    %303 = vmatpush.xpose.msra.mxu0 %v107
    %304 = vmatpush.xpose.msra.mxu0 %v105
    %305 = vmatpush.xpose.msra.mxu0 %v103
    %306 = vmatpush.xpose.msra.mxu0 %v101
    %307 = vmatpush.xpose.msra.mxu0 %v99
    %308 = vmatpush.xpose.msra.mxu0 %v97
    %309 = vmatpush.xpose.msra.mxu0 %v95
    %310 = vmatpush.xpose.msra.mxu0 %v93
    %311 = vmatpush.xpose.msra.mxu0 %v91
    %312 = vmatpush.xpose.msra.mxu0 %v89
    %313 = vmatpush.xpose.msra.mxu0 %v87
    %314 = vmatpush.xpose.msra.mxu0 %v85
    %315 = vmatpush.xpose.msra.mxu0 %v83
    %316 = vmatpush.xpose.msra.mxu0 %v81
    %317 = vmatpush.xpose.msra.mxu0 %v79
    %318 = vmatpush.xpose.msra.mxu0 %v77
    %319 = vmatmul.f32.gmra.mxu0 %v77
    %v320 = vpop.f32.mrf.mxu0
    %v321 = vadd.f32 %v256, %v320
    %322 = vmatmul.f32.gmra.mxu0 %v79
    %v323 = vpop.f32.mrf.mxu0
    %v324 = vadd.f32 %v259, %v323
    %325 = vmatmul.f32.gmra.mxu0 %v81
    %v326 = vpop.f32.mrf.mxu0
    %v327 = vadd.f32 %v262, %v326
    %328 = vmatmul.f32.gmra.mxu0 %v83
    %v329 = vpop.f32.mrf.mxu0
    %v330 = vadd.f32 %v265, %v329
    %331 = vmatmul.f32.gmra.mxu0 %v85
    %v332 = vpop.f32.mrf.mxu0
    %v333 = vadd.f32 %v268, %v332
    %334 = vmatmul.f32.gmra.mxu0 %v87
    %v335 = vpop.f32.mrf.mxu0
    %v336 = vadd.f32 %v271, %v335
    %337 = vmatmul.f32.gmra.mxu0 %v89
    %v338 = vpop.f32.mrf.mxu0
    %v339 = vadd.f32 %v274, %v338
    %340 = vmatmul.f32.gmra.mxu0 %v91
    %v341 = vpop.f32.mrf.mxu0
    %v342 = vadd.f32 %v277, %v341
    %343 = vmatmul.f32.gmra.mxu0 %v93
    %v344 = vpop.f32.mrf.mxu0
    %v345 = vadd.f32 %v280, %v344
    %346 = vmatmul.f32.gmra.mxu0 %v95
    %v347 = vpop.f32.mrf.mxu0
    %v348 = vadd.f32 %v283, %v347
    %349 = vmatmul.f32.gmra.mxu0 %v97
    %v350 = vpop.f32.mrf.mxu0
    %v351 = vadd.f32 %v286, %v350
    %352 = vmatmul.f32.gmra.mxu0 %v99
    %v353 = vpop.f32.mrf.mxu0
    %v354 = vadd.f32 %v289, %v353
    %355 = vmatmul.f32.gmra.mxu0 %v101
    %v356 = vpop.f32.mrf.mxu0
    %v357 = vadd.f32 %v292, %v356
    %358 = vmatmul.f32.gmra.mxu0 %v103
    %v359 = vpop.f32.mrf.mxu0
    %v360 = vadd.f32 %v295, %v359
    %361 = vmatmul.f32.gmra.mxu0 %v105
    %v362 = vpop.f32.mrf.mxu0
    %v363 = vadd.f32 %v298, %v362
    %364 = vmatmul.f32.gmra.mxu0 %v107
    %v365 = vpop.f32.mrf.mxu0
    %v366 = vadd.f32 %v301, %v365
    %367 = vdwg.mxu0
    %v368 = vsub.f32 %v191, %v321
    %v369 = vsub.f32 %v194, %v324
    %v370 = vsub.f32 %v197, %v327
    %v371 = vsub.f32 %v200, %v330
    %v372 = vsub.f32 %v203, %v333
    %v373 = vsub.f32 %v206, %v336
    %v374 = vsub.f32 %v209, %v339
    %v375 = vsub.f32 %v212, %v342
    %v376 = vsub.f32 %v215, %v345
    %v377 = vsub.f32 %v218, %v348
    %v378 = vsub.f32 %v221, %v351
    %v379 = vsub.f32 %v224, %v354
    %v380 = vsub.f32 %v227, %v357
    %v381 = vsub.f32 %v230, %v360
    %v382 = vsub.f32 %v233, %v363
    %v383 = vsub.f32 %v236, %v366
    %p384 = scmp.eq.s32.totalorder 0, 0
    // Predicated region
    $region18: #{tpu_custom_call.1} parent=1 // pred_check
      %p385 = pneg %p384
    $region19: #{tpu_custom_call.1} parent=1 // pred_check_branch
      %387 = sbr.rel (%p385) target = $region21
    $region20: #{tpu_custom_call.1} parent=1 // pred_region
      %388 = vst [vmem:[#allocation2] sm:$0xff] %v368
      %389 = vst [vmem:[#allocation2 + $0x8] sm:$0xff] %v369
      %390 = vst [vmem:[#allocation2 + $0x10] sm:$0xff] %v370
      %391 = vst [vmem:[#allocation2 + $0x18] sm:$0xff] %v371
      %392 = vst [vmem:[#allocation2 + $0x20] sm:$0xff] %v372
      %393 = vst [vmem:[#allocation2 + $0x28] sm:$0xff] %v373
      %394 = vst [vmem:[#allocation2 + $0x30] sm:$0xff] %v374
      %395 = vst [vmem:[#allocation2 + $0x38] sm:$0xff] %v375
      %396 = vst [vmem:[#allocation2 + $0x40] sm:$0xff] %v376
      %397 = vst [vmem:[#allocation2 + $0x48] sm:$0xff] %v377
      %398 = vst [vmem:[#allocation2 + $0x50] sm:$0xff] %v378
      %399 = vst [vmem:[#allocation2 + $0x58] sm:$0xff] %v379
      %400 = vst [vmem:[#allocation2 + $0x60] sm:$0xff] %v380
      %401 = vst [vmem:[#allocation2 + $0x68] sm:$0xff] %v381
      %402 = vst [vmem:[#allocation2 + $0x70] sm:$0xff] %v382
      %403 = vst [vmem:[#allocation2 + $0x78] sm:$0xff] %v383
    $region21: #{tpu_custom_call.1} parent=1 // pred_fallthru
      _
    %p404 = scmp.gt.s32.totalorder 0, 0
    // Predicated region
    $region22: #{tpu_custom_call.1} parent=1 // pred_check
      %p405 = pneg %p404
    $region23: #{tpu_custom_call.1} parent=1 // pred_check_branch
      %407 = sbr.rel (%p405) target = $region25
    $region24: #{tpu_custom_call.1} parent=1 // pred_region
      %v408 = vld [vmem:[#allocation2] sm:$0xff]
      %v409 = vld [vmem:[#allocation2 + $0x8] sm:$0xff]
      %v410 = vld [vmem:[#allocation2 + $0x10] sm:$0xff]
      %v411 = vld [vmem:[#allocation2 + $0x18] sm:$0xff]
      %v412 = vld [vmem:[#allocation2 + $0x20] sm:$0xff]
      %v413 = vld [vmem:[#allocation2 + $0x28] sm:$0xff]
      %v414 = vld [vmem:[#allocation2 + $0x30] sm:$0xff]
      %v415 = vld [vmem:[#allocation2 + $0x38] sm:$0xff]
      %v416 = vld [vmem:[#allocation2 + $0x40] sm:$0xff]
      %v417 = vld [vmem:[#allocation2 + $0x48] sm:$0xff]
      %v418 = vld [vmem:[#allocation2 + $0x50] sm:$0xff]
      %v419 = vld [vmem:[#allocation2 + $0x58] sm:$0xff]
      %v420 = vld [vmem:[#allocation2 + $0x60] sm:$0xff]
      %v421 = vld [vmem:[#allocation2 + $0x68] sm:$0xff]
      %v422 = vld [vmem:[#allocation2 + $0x70] sm:$0xff]
      %v423 = vld [vmem:[#allocation2 + $0x78] sm:$0xff]
      %v424 = vadd.f32 %v408, %v368
      %v425 = vadd.f32 %v409, %v369
      %v426 = vadd.f32 %v410, %v370
      %v427 = vadd.f32 %v411, %v371
      %v428 = vadd.f32 %v412, %v372
      %v429 = vadd.f32 %v413, %v373
      %v430 = vadd.f32 %v414, %v374
      %v431 = vadd.f32 %v415, %v375
      %v432 = vadd.f32 %v416, %v376
      %v433 = vadd.f32 %v417, %v377
      %v434 = vadd.f32 %v418, %v378
      %v435 = vadd.f32 %v419, %v379
      %v436 = vadd.f32 %v420, %v380
      %v437 = vadd.f32 %v421, %v381
      %v438 = vadd.f32 %v422, %v382
      %v439 = vadd.f32 %v423, %v383
      %440 = vst [vmem:[#allocation2] sm:$0xff] %v424
      %441 = vst [vmem:[#allocation2 + $0x8] sm:$0xff] %v425
      %442 = vst [vmem:[#allocation2 + $0x10] sm:$0xff] %v426
      %443 = vst [vmem:[#allocation2 + $0x18] sm:$0xff] %v427
      %444 = vst [vmem:[#allocation2 + $0x20] sm:$0xff] %v428
      %445 = vst [vmem:[#allocation2 + $0x28] sm:$0xff] %v429
      %446 = vst [vmem:[#allocation2 + $0x30] sm:$0xff] %v430
      %447 = vst [vmem:[#allocation2 + $0x38] sm:$0xff] %v431
      %448 = vst [vmem:[#allocation2 + $0x40] sm:$0xff] %v432
      %449 = vst [vmem:[#allocation2 + $0x48] sm:$0xff] %v433
      %450 = vst [vmem:[#allocation2 + $0x50] sm:$0xff] %v434
      %451 = vst [vmem:[#allocation2 + $0x58] sm:$0xff] %v435
      %452 = vst [vmem:[#allocation2 + $0x60] sm:$0xff] %v436
      %453 = vst [vmem:[#allocation2 + $0x68] sm:$0xff] %v437
      %454 = vst [vmem:[#allocation2 + $0x70] sm:$0xff] %v438
      %455 = vst [vmem:[#allocation2 + $0x78] sm:$0xff] %v439
    $region25: #{tpu_custom_call.1} parent=1 // pred_fallthru
      _
    // Predicated region
    $region26: #{tpu_custom_call.1} parent=1 // pred_check
      %p456 = pneg %p384
    $region27: #{tpu_custom_call.1} parent=1 // pred_check_branch
      %458 = sbr.rel (%p456) target = $region29
    $region28: #{tpu_custom_call.1} parent=1 // pred_region
      %v459 = vld [vmem:[#allocation2] sm:$0xff]
      %v460 = vld [vmem:[#allocation2 + $0x8] sm:$0xff]
      %v461 = vld [vmem:[#allocation2 + $0x10] sm:$0xff]
      %v462 = vld [vmem:[#allocation2 + $0x18] sm:$0xff]
      %v463 = vld [vmem:[#allocation2 + $0x20] sm:$0xff]
      %v464 = vld [vmem:[#allocation2 + $0x28] sm:$0xff]
      %v465 = vld [vmem:[#allocation2 + $0x30] sm:$0xff]
      %v466 = vld [vmem:[#allocation2 + $0x38] sm:$0xff]
      %v467 = vld [vmem:[#allocation2 + $0x40] sm:$0xff]
      %v468 = vld [vmem:[#allocation2 + $0x48] sm:$0xff]
      %v469 = vld [vmem:[#allocation2 + $0x50] sm:$0xff]
      %v470 = vld [vmem:[#allocation2 + $0x58] sm:$0xff]
      %v471 = vld [vmem:[#allocation2 + $0x60] sm:$0xff]
      %v472 = vld [vmem:[#allocation2 + $0x68] sm:$0xff]
      %v473 = vld [vmem:[#allocation2 + $0x70] sm:$0xff]
      %v474 = vld [vmem:[#allocation2 + $0x78] sm:$0xff]
      %v475 = vmul.f32 %v459, 0.00048828125
      %v476 = vmul.f32 %v460, 0.00048828125
      %v477 = vmul.f32 %v461, 0.00048828125
      %v478 = vmul.f32 %v462, 0.00048828125
      %v479 = vmul.f32 %v463, 0.00048828125
      %v480 = vmul.f32 %v464, 0.00048828125
      %v481 = vmul.f32 %v465, 0.00048828125
      %v482 = vmul.f32 %v466, 0.00048828125
      %v483 = vmul.f32 %v467, 0.00048828125
      %v484 = vmul.f32 %v468, 0.00048828125
      %v485 = vmul.f32 %v469, 0.00048828125
      %v486 = vmul.f32 %v470, 0.00048828125
      %v487 = vmul.f32 %v471, 0.00048828125
      %v488 = vmul.f32 %v472, 0.00048828125
      %v489 = vmul.f32 %v473, 0.00048828125
      %v490 = vmul.f32 %v474, 0.00048828125
      %v491 = vmul.f32 %v475, %v475
      %v492 = vmul.f32 %v476, %v476
      %v493 = vmul.f32 %v477, %v477
      %v494 = vmul.f32 %v478, %v478
      %v495 = vmul.f32 %v479, %v479
      %v496 = vmul.f32 %v480, %v480
      %v497 = vmul.f32 %v481, %v481
      %v498 = vmul.f32 %v482, %v482
      %v499 = vmul.f32 %v483, %v483
      %v500 = vmul.f32 %v484, %v484
      %v501 = vmul.f32 %v485, %v485
      %v502 = vmul.f32 %v486, %v486
      %v503 = vmul.f32 %v487, %v487
      %v504 = vmul.f32 %v488, %v488
      %v505 = vmul.f32 %v489, %v489
      %v506 = vmul.f32 %v490, %v490
      %v507 = vadd.f32 %v491, %v492
      %v508 = vadd.f32 %v507, %v493
      %v509 = vadd.f32 %v508, %v494
      %v510 = vadd.f32 %v509, %v495
      %v511 = vadd.f32 %v510, %v496
      %v512 = vadd.f32 %v511, %v497
      %v513 = vadd.f32 %v512, %v498
      %v514 = vadd.f32 %v513, %v499
      %v515 = vadd.f32 %v514, %v500
      %v516 = vadd.f32 %v515, %v501
      %v517 = vadd.f32 %v516, %v502
      %v518 = vadd.f32 %v517, %v503
      %v519 = vadd.f32 %v518, %v504
      %v520 = vadd.f32 %v519, %v505
      %v521 = vadd.f32 %v520, %v506
      %522 = vadd.xlane.f32.xlu0 %v521
      %v523 = vpop.xlane.xlu0 %522
      %v524 = vrot.slane %v523, 4
      %v525 = vadd.f32 %v523, %v524
      %v526 = vrot.slane %v525, 2
      %v527 = vadd.f32 %v525, %v526
      %v528 = vrot.slane %v527, 1
      %v529 = vadd.f32 %v527, %v528
      %s530 = vtos %v529
      %v531 = vstv %s530
      %532 = vst [vmem:[#allocation8] sm:$0xff] %v531
    $region29: #{tpu_custom_call.1} parent=1 // pred_fallthru
      _
    // Predicated region
    $region30: #{tpu_custom_call.1} parent=1 // pred_check
      _
    $region31: #{tpu_custom_call.1} parent=1 // pred_check_branch
      %534 = sbr.rel (0) target = $region33
    $region32: #{tpu_custom_call.1} parent=1 // pred_region
      %536 = vsyncadd [#allocation5], 0
      %s538 = sshll.u32 [#allocation8], 4
      %s539 = int_to_ptr.vmem [resolvable:$true] %s538
      %s540 = sshll.u32 %s2, 4
      %s541 = int_to_ptr.hbm [resolvable:$true] %s540
      %543 = dma.vmem_to_hbm [thread:$0]  %s539, 128, %s541, [#allocation5]
    $region33: #{tpu_custom_call.1} parent=1 // pred_fallthru
      _
    // Predicated region
    $region34: #{tpu_custom_call.1} parent=1 // pred_check
      _
    $region35: #{tpu_custom_call.1} parent=1 // pred_check_branch
      %545 = sbr.rel (0) target = $region37
    $region36: #{tpu_custom_call.1} parent=1 // pred_region
      %547 = dma.done [#allocation5], 128
    $region37: #{tpu_custom_call.1} parent=1 // pred_fallthru
      _
    %548 = vsyncpa [#allocation4], 1
    %549 = vsyncpa [#allocation7], 1
    %550 = vsyncpa [#allocation5], 1

</llo_original>
